<compile_context>
chip_gen: v7x
topology: tpu7x:2x2x1
jax: 0.10.0
libtpu: 0.0.40
codegen_flags: <defaults>
</compile_context>

<pallas_src>
import functools

import jax
import jax.numpy as jnp
from jax import lax
from jax.experimental import pallas as pl
from jax.experimental.pallas import tpu as pltpu


def rnn_fc_kernel(tstop_ref, len_ref, xw_ref, whh_ref, wfc_ref, bfc_ref,
                  out_ref, h_scr, sel_scr, *, tc):
    """One grid step == one block of `tc` RNN time steps.

    tstop_ref : (1,) int32 in SMEM  -- max valid length + 1 (skip trailing pad blocks)
    len_ref   : (Bp, 1) int32       -- last-valid-token index per row (-1 for pad rows)
    xw_ref    : (tc, Bp, Hp) f32    -- precomputed x @ W_ih + b, time-major block
    h_scr     : (Bp, Hp) running hidden state (persists across grid steps)
    sel_scr   : (Bp, Hp) hidden state captured at each row's last valid token
    """
    tb = pl.program_id(0)
    nb = pl.num_programs(0)

    @pl.when(tb == 0)
    def _():
        h_scr[...] = jnp.zeros_like(h_scr)
        sel_scr[...] = jnp.zeros_like(sel_scr)

    t0 = tb * tc
    t_stop = tstop_ref[0]

    # Skip blocks that lie entirely past the longest valid sequence.
    @pl.when(t0 < t_stop)
    def _():
        lengths = len_ref[...]            # (Bp, 1) int32
        whh = whh_ref[...]                # (Hp, Hp) resident weight

        def step(i, carry):
            h, sel = carry
            h_new = jnp.tanh(
                xw_ref[i]
                + jnp.dot(h, whh, preferred_element_type=jnp.float32))
            sel_new = jnp.where(lengths == t0 + i, h_new, sel)
            return h_new, sel_new

        h, sel = lax.fori_loop(0, tc, step,
                               (h_scr[...], sel_scr[...]), unroll=True)
        h_scr[...] = h
        sel_scr[...] = sel

    @pl.when(tb == nb - 1)
    def _():
        out_ref[...] = (
            jnp.dot(sel_scr[...], wfc_ref[...],
                    preferred_element_type=jnp.float32)
            + bfc_ref[...])


def simple_rnn_forward(texts, params, *, tc=None):
    emb_w = params["embedding"]          # (V, E), row pad_idx is zero
    w_ih = params["w_ih"]                # (E, H)
    w_hh = params["w_hh"]                # (H, H)
    b = params["b"]                      # (1, H)  == b_ih + b_hh
    w_fc = params["w_fc"]                # (H, O)
    b_fc = params["b_fc"]                # (1, O)

    B, T = texts.shape
    H = w_hh.shape[0]
    O = w_fc.shape[1]

    # texts_lengths = (texts != 0).sum(1) - 1  (PyTorch semantics; -1 wraps to T-1)
    lengths = jnp.sum((texts != 0).astype(jnp.int32), axis=1) - 1
    lengths = jnp.where(lengths < 0, T - 1, lengths).astype(jnp.int32)
    t_stop = (jnp.max(lengths) + 1).astype(jnp.int32).reshape(1)   # scalar prefetch

    # Hoisted input projection: one big matmul; output already time-major (T, B, H).
    x = jnp.take(emb_w, texts, axis=0)                   # (B, T, E) embedding lookup (glue)
    xw = jnp.einsum("bte,eh->tbh", x, w_ih) + b          # (T, B, H) incl. bias

    # --- pad to hardware tiles: sublanes of 8 for B, lanes of 128 for H / O ----
    rup = lambda v, m: ((v + m - 1) // m) * m
    B_pad = rup(B, 8)
    H_pad = rup(H, 128)
    O_pad = rup(O, 128)
    if tc is None:
        tc = T if T <= 32 else 16        # time steps fused per grid invocation
    T_pad = rup(T, tc)
    nb = T_pad // tc

    xw_p = jnp.zeros((T_pad, B_pad, H_pad), jnp.float32).at[:T, :B, :H].set(xw)
    whh_p = jnp.zeros((H_pad, H_pad), jnp.float32).at[:H, :H].set(w_hh)
    wfc_p = jnp.zeros((H_pad, O_pad), jnp.float32).at[:H, :O].set(w_fc)
    bfc_p = jnp.zeros((1, O_pad), jnp.float32).at[:, :O].set(b_fc)
    len_p = jnp.full((B_pad, 1), -1, jnp.int32).at[:B, 0].set(lengths)

    kernel = functools.partial(rnn_fc_kernel, tc=tc)

    out = pl.pallas_call(
        kernel,
        out_shape=jax.ShapeDtypeStruct((B_pad, O_pad), jnp.float32),
        grid_spec=pltpu.PrefetchScalarGridSpec(
            num_scalar_prefetch=1,                 # t_stop -> SMEM
            grid=(nb,),
            in_specs=[
                pl.BlockSpec((B_pad, 1), lambda tb, ts: (0, 0)),          # lengths
                pl.BlockSpec((tc, B_pad, H_pad), lambda tb, ts: (tb, 0, 0)),  # xw block
                pl.BlockSpec((H_pad, H_pad), lambda tb, ts: (0, 0)),      # W_hh
                pl.BlockSpec((H_pad, O_pad), lambda tb, ts: (0, 0)),      # fc weight
                pl.BlockSpec((1, O_pad), lambda tb, ts: (0, 0)),          # fc bias
            ],
            out_specs=pl.BlockSpec((B_pad, O_pad), lambda tb, ts: (0, 0)),
            scratch_shapes=[pltpu.VMEM((B_pad, H_pad), jnp.float32),      # h
                            pltpu.VMEM((B_pad, H_pad), jnp.float32)],     # selected h
        ),
        compiler_params=pltpu.CompilerParams(
            dimension_semantics=("arbitrary",)),   # sequential recurrence over time
    )(t_stop, len_p, xw_p, whh_p, wfc_p, bfc_p)

    return out[:B, :O]


def reference_forward(texts, params):
    """Pure-JAX reference mirroring the PyTorch forward."""
    emb_w = params["embedding"]
    B, T = texts.shape
    H = params["w_hh"].shape[0]

    lengths = jnp.sum((texts != 0).astype(jnp.int32), axis=1) - 1
    lengths = jnp.where(lengths < 0, T - 1, lengths)

    x = jnp.take(emb_w, texts, axis=0)            # (B, T, E)

    def step(h, x_t):
        h_new = jnp.tanh(x_t @ params["w_ih"] + h @ params["w_hh"]
                         + params["b"])
        return h_new, h_new

    h0 = jnp.zeros((B, H), jnp.float32)
    _, outs = lax.scan(step, h0, jnp.transpose(x, (1, 0, 2)))  # (T, B, H)
    outs = jnp.transpose(outs, (1, 0, 2))                      # (B, T, H)
    sel = outs[jnp.arange(B), lengths]                         # (B, H)
    return sel @ params["w_fc"] + params["b_fc"]


def init_params(key, vocab_size, embedding_dim, hidden_dim, output_dim, pad_idx):
    k1, k2, k3, k4, k5, k6, k7 = jax.random.split(key, 7)
    emb = jax.random.normal(k1, (vocab_size, embedding_dim), jnp.float32)
    emb = emb.at[pad_idx].set(0.0)                 # padding_idx row zeroed

    bound = 1.0 / (hidden_dim ** 0.5)
    u = lambda k, shape: jax.random.uniform(k, shape, jnp.float32, -bound, bound)
    w_ih = u(k2, (embedding_dim, hidden_dim))      # stored transposed (E, H)
    w_hh = u(k3, (hidden_dim, hidden_dim))         # stored transposed (H, H)
    b_ih = u(k4, (1, hidden_dim))
    b_hh = u(k5, (1, hidden_dim))

    w_fc = u(k6, (hidden_dim, output_dim))         # stored transposed (H, O)
    b_fc = u(k7, (1, output_dim))

    return {
        "embedding": emb,
        "w_ih": w_ih,
        "w_hh": w_hh,
        "b": b_ih + b_hh,
        "w_fc": w_fc,
        "b_fc": b_fc,
    }


if __name__ == "__main__":
    VOCAB, PAD = 50, 0
    EMB, HID, OUT = 32, 32, 4
    B, T = 2, 8

    key = jax.random.PRNGKey(0)
    k_params, k_tok = jax.random.split(key)

    params = init_params(k_params, VOCAB, EMB, HID, OUT, PAD)

    # Token ids in [1, VOCAB) with trailing padding (0) to exercise the gather.
    texts = jax.random.randint(k_tok, (B, T), 1, VOCAB, dtype=jnp.int32)
    valid_lens = jnp.array([[5], [8]], dtype=jnp.int32)
    pos = jnp.arange(T, dtype=jnp.int32)[None, :]
    texts = jnp.where(pos < valid_lens, texts, 0)

    out = simple_rnn_forward(texts, params)
    out = jax.block_until_ready(out)

    ref = reference_forward(texts, params)
    assert out.shape == (B, OUT)
    assert jnp.allclose(out, ref, atol=1e-5, rtol=1e-5), (out, ref)

    print("KERNEL_OK")
</pallas_src>

<mosaic_0001>
module attributes {stable_mosaic.version = 11 : i64} {
  func.func @rnn_fc_kernel(%arg0: i32, %arg1: memref<1xi32, #tpu.memory_space<smem>>, %arg2: memref<8x1xi32, #tpu.memory_space<vmem>>, %arg3: memref<8x8x128xf32, #tpu.memory_space<vmem>>, %arg4: memref<128x128xf32, #tpu.memory_space<vmem>>, %arg5: memref<128x128xf32, #tpu.memory_space<vmem>>, %arg6: memref<1x128xf32, #tpu.memory_space<vmem>>, %arg7: memref<8x128xf32, #tpu.memory_space<vmem>>, %arg8: memref<8x128xf32, #tpu.memory_space<vmem>>, %arg9: memref<8x128xf32, #tpu.memory_space<vmem>>) attributes {dimension_semantics = [#tpu.dimension_semantics<arbitrary>], iteration_bounds = array<i64: 1>, scalar_prefetch = 1 : i64, scratch_operands = 2 : i64, tpu.core_type = #tpu.core_type<tc>, window_params = [{pipeline_mode = #tpu.pipeline_mode<synchronous>, transform_indices = @transform_0, window_bounds = array<i64: 8, 1>}, {transform_indices = @transform_1, window_bounds = array<i64: 8, 8, 128>}, {pipeline_mode = #tpu.pipeline_mode<synchronous>, transform_indices = @transform_2, window_bounds = array<i64: 128, 128>}, {pipeline_mode = #tpu.pipeline_mode<synchronous>, transform_indices = @transform_3, window_bounds = array<i64: 128, 128>}, {pipeline_mode = #tpu.pipeline_mode<synchronous>, transform_indices = @transform_4, window_bounds = array<i64: 1, 128>}, {pipeline_mode = #tpu.pipeline_mode<synchronous>, transform_indices = @transform_5, window_bounds = array<i64: 8, 128>}]} {
    %c0_i32 = arith.constant 0 : i32
    %0 = arith.cmpi eq, %arg0, %c0_i32 : i32
    %1 = arith.extui %0 : i1 to i32
    %c0_i32_0 = arith.constant 0 : i32
    %2 = arith.cmpi ne, %1, %c0_i32_0 : i32
    scf.if %2 {
      %cst = arith.constant 0.000000e+00 : f32
      %11 = vector.broadcast %cst : f32 to vector<8x128xf32>
      %c0_4 = arith.constant 0 : index
      %c0_5 = arith.constant 0 : index
      %12 = vector.load %arg8[%c0_4, %c0_5] : memref<8x128xf32, #tpu.memory_space<vmem>>, vector<8x128xf32>
      tpu.vector_store %arg8[%c0_4, %c0_5], %11 {strides = array<i32>} : memref<8x128xf32, #tpu.memory_space<vmem>>, vector<8x128xf32>,
      %cst_6 = arith.constant 0.000000e+00 : f32
      %13 = vector.broadcast %cst_6 : f32 to vector<8x128xf32>
      %c0_7 = arith.constant 0 : index
      %c0_8 = arith.constant 0 : index
      %14 = vector.load %arg9[%c0_7, %c0_8] : memref<8x128xf32, #tpu.memory_space<vmem>>, vector<8x128xf32>
      tpu.vector_store %arg9[%c0_7, %c0_8], %13 {strides = array<i32>} : memref<8x128xf32, #tpu.memory_space<vmem>>, vector<8x128xf32>,
    } else {
    }
    %c8_i32 = arith.constant 8 : i32
    %3 = arith.muli %arg0, %c8_i32 : i32
    %c0 = arith.constant 0 : index
    %4 = memref.load %arg1[%c0] : memref<1xi32, #tpu.memory_space<smem>>
    %5 = arith.cmpi slt, %3, %4 : i32
    %6 = arith.extui %5 : i1 to i32
    %c0_i32_1 = arith.constant 0 : i32
    %7 = arith.cmpi ne, %6, %c0_i32_1 : i32
    scf.if %7 {
      %c0_4 = arith.constant 0 : index
      %c0_5 = arith.constant 0 : index
      %11 = vector.load %arg2[%c0_4, %c0_5] : memref<8x1xi32, #tpu.memory_space<vmem>>, vector<8x1xi32>
      %c0_6 = arith.constant 0 : index
      %c0_7 = arith.constant 0 : index
      %12 = vector.load %arg4[%c0_6, %c0_7] : memref<128x128xf32, #tpu.memory_space<vmem>>, vector<128x128xf32>
      %c0_8 = arith.constant 0 : index
      %c0_9 = arith.constant 0 : index
      %13 = vector.load %arg8[%c0_8, %c0_9] : memref<8x128xf32, #tpu.memory_space<vmem>>, vector<8x128xf32>
      %c0_10 = arith.constant 0 : index
      %c0_11 = arith.constant 0 : index
      %14 = vector.load %arg9[%c0_10, %c0_11] : memref<8x128xf32, #tpu.memory_space<vmem>>, vector<8x128xf32>
      %c0_i32_12 = arith.constant 0 : i32
      %15 = arith.index_cast %c0_i32_12 : i32 to index
      %c0_13 = arith.constant 0 : index
      %c0_14 = arith.constant 0 : index
      %16 = vector.load %arg3[%15, %c0_13, %c0_14] : memref<8x8x128xf32, #tpu.memory_space<vmem>>, vector<1x8x128xf32>
      %17 = vector.shape_cast %16 : vector<1x8x128xf32> to vector<8x128xf32>
      %cst = arith.constant dense<0.000000e+00> : vector<8x128xf32>
      %18 = tpu.matmul %13, %12, %cst {dimension_numbers = #tpu.dot_dimension_numbers<[1], [0], [0], [1], [0, 0, 1, 1], [], []>} : vector<8x128xf32>, vector<128x128xf32>, vector<8x128xf32> -> vector<8x128xf32>
      %19 = arith.addf %17, %18 : vector<8x128xf32>
      %20 = math.tanh %19 : vector<8x128xf32>
      %21 = arith.addi %3, %c0_i32_12 : i32
      %22 = vector.broadcast %21 : i32 to vector<8x1xi32>
      %23 = arith.cmpi eq, %11, %22 : vector<8x1xi32>
      %24 = vector.shape_cast %23 : vector<8x1xi1> to vector<8x1xi1>
      %25 = vector.broadcast %24 : vector<8x1xi1> to vector<8x128xi1>
      %26 = arith.select %25, %20, %14 : vector<8x128xi1>, vector<8x128xf32>
      %c1_i32 = arith.constant 1 : i32
      %27 = arith.index_cast %c1_i32 : i32 to index
      %c0_15 = arith.constant 0 : index
      %c0_16 = arith.constant 0 : index
      %28 = vector.load %arg3[%27, %c0_15, %c0_16] : memref<8x8x128xf32, #tpu.memory_space<vmem>>, vector<1x8x128xf32>
      %29 = vector.shape_cast %28 : vector<1x8x128xf32> to vector<8x128xf32>
      %cst_17 = arith.constant dense<0.000000e+00> : vector<8x128xf32>
      %30 = tpu.matmul %20, %12, %cst_17 {dimension_numbers = #tpu.dot_dimension_numbers<[1], [0], [0], [1], [0, 0, 1, 1], [], []>} : vector<8x128xf32>, vector<128x128xf32>, vector<8x128xf32> -> vector<8x128xf32>
      %31 = arith.addf %29, %30 : vector<8x128xf32>
      %32 = math.tanh %31 : vector<8x128xf32>
      %33 = arith.addi %3, %c1_i32 : i32
      %34 = vector.broadcast %33 : i32 to vector<8x1xi32>
      %35 = arith.cmpi eq, %11, %34 : vector<8x1xi32>
      %36 = vector.shape_cast %35 : vector<8x1xi1> to vector<8x1xi1>
      %37 = vector.broadcast %36 : vector<8x1xi1> to vector<8x128xi1>
      %38 = arith.select %37, %32, %26 : vector<8x128xi1>, vector<8x128xf32>
      %c2_i32 = arith.constant 2 : i32
      %39 = arith.index_cast %c2_i32 : i32 to index
      %c0_18 = arith.constant 0 : index
      %c0_19 = arith.constant 0 : index
      %40 = vector.load %arg3[%39, %c0_18, %c0_19] : memref<8x8x128xf32, #tpu.memory_space<vmem>>, vector<1x8x128xf32>
      %41 = vector.shape_cast %40 : vector<1x8x128xf32> to vector<8x128xf32>
      %cst_20 = arith.constant dense<0.000000e+00> : vector<8x128xf32>
      %42 = tpu.matmul %32, %12, %cst_20 {dimension_numbers = #tpu.dot_dimension_numbers<[1], [0], [0], [1], [0, 0, 1, 1], [], []>} : vector<8x128xf32>, vector<128x128xf32>, vector<8x128xf32> -> vector<8x128xf32>
      %43 = arith.addf %41, %42 : vector<8x128xf32>
      %44 = math.tanh %43 : vector<8x128xf32>
      %45 = arith.addi %3, %c2_i32 : i32
      %46 = vector.broadcast %45 : i32 to vector<8x1xi32>
      %47 = arith.cmpi eq, %11, %46 : vector<8x1xi32>
      %48 = vector.shape_cast %47 : vector<8x1xi1> to vector<8x1xi1>
      %49 = vector.broadcast %48 : vector<8x1xi1> to vector<8x128xi1>
      %50 = arith.select %49, %44, %38 : vector<8x128xi1>, vector<8x128xf32>
      %c3_i32 = arith.constant 3 : i32
      %51 = arith.index_cast %c3_i32 : i32 to index
      %c0_21 = arith.constant 0 : index
      %c0_22 = arith.constant 0 : index
      %52 = vector.load %arg3[%51, %c0_21, %c0_22] : memref<8x8x128xf32, #tpu.memory_space<vmem>>, vector<1x8x128xf32>
      %53 = vector.shape_cast %52 : vector<1x8x128xf32> to vector<8x128xf32>
      %cst_23 = arith.constant dense<0.000000e+00> : vector<8x128xf32>
      %54 = tpu.matmul %44, %12, %cst_23 {dimension_numbers = #tpu.dot_dimension_numbers<[1], [0], [0], [1], [0, 0, 1, 1], [], []>} : vector<8x128xf32>, vector<128x128xf32>, vector<8x128xf32> -> vector<8x128xf32>
      %55 = arith.addf %53, %54 : vector<8x128xf32>
      %56 = math.tanh %55 : vector<8x128xf32>
      %57 = arith.addi %3, %c3_i32 : i32
      %58 = vector.broadcast %57 : i32 to vector<8x1xi32>
      %59 = arith.cmpi eq, %11, %58 : vector<8x1xi32>
      %60 = vector.shape_cast %59 : vector<8x1xi1> to vector<8x1xi1>
      %61 = vector.broadcast %60 : vector<8x1xi1> to vector<8x128xi1>
      %62 = arith.select %61, %56, %50 : vector<8x128xi1>, vector<8x128xf32>
      %c4_i32 = arith.constant 4 : i32
      %63 = arith.index_cast %c4_i32 : i32 to index
      %c0_24 = arith.constant 0 : index
      %c0_25 = arith.constant 0 : index
      %64 = vector.load %arg3[%63, %c0_24, %c0_25] : memref<8x8x128xf32, #tpu.memory_space<vmem>>, vector<1x8x128xf32>
      %65 = vector.shape_cast %64 : vector<1x8x128xf32> to vector<8x128xf32>
      %cst_26 = arith.constant dense<0.000000e+00> : vector<8x128xf32>
      %66 = tpu.matmul %56, %12, %cst_26 {dimension_numbers = #tpu.dot_dimension_numbers<[1], [0], [0], [1], [0, 0, 1, 1], [], []>} : vector<8x128xf32>, vector<128x128xf32>, vector<8x128xf32> -> vector<8x128xf32>
      %67 = arith.addf %65, %66 : vector<8x128xf32>
      %68 = math.tanh %67 : vector<8x128xf32>
      %69 = arith.addi %3, %c4_i32 : i32
      %70 = vector.broadcast %69 : i32 to vector<8x1xi32>
      %71 = arith.cmpi eq, %11, %70 : vector<8x1xi32>
      %72 = vector.shape_cast %71 : vector<8x1xi1> to vector<8x1xi1>
      %73 = vector.broadcast %72 : vector<8x1xi1> to vector<8x128xi1>
      %74 = arith.select %73, %68, %62 : vector<8x128xi1>, vector<8x128xf32>
      %c5_i32 = arith.constant 5 : i32
      %75 = arith.index_cast %c5_i32 : i32 to index
      %c0_27 = arith.constant 0 : index
      %c0_28 = arith.constant 0 : index
      %76 = vector.load %arg3[%75, %c0_27, %c0_28] : memref<8x8x128xf32, #tpu.memory_space<vmem>>, vector<1x8x128xf32>
      %77 = vector.shape_cast %76 : vector<1x8x128xf32> to vector<8x128xf32>
      %cst_29 = arith.constant dense<0.000000e+00> : vector<8x128xf32>
      %78 = tpu.matmul %68, %12, %cst_29 {dimension_numbers = #tpu.dot_dimension_numbers<[1], [0], [0], [1], [0, 0, 1, 1], [], []>} : vector<8x128xf32>, vector<128x128xf32>, vector<8x128xf32> -> vector<8x128xf32>
      %79 = arith.addf %77, %78 : vector<8x128xf32>
      %80 = math.tanh %79 : vector<8x128xf32>
      %81 = arith.addi %3, %c5_i32 : i32
      %82 = vector.broadcast %81 : i32 to vector<8x1xi32>
      %83 = arith.cmpi eq, %11, %82 : vector<8x1xi32>
      %84 = vector.shape_cast %83 : vector<8x1xi1> to vector<8x1xi1>
      %85 = vector.broadcast %84 : vector<8x1xi1> to vector<8x128xi1>
      %86 = arith.select %85, %80, %74 : vector<8x128xi1>, vector<8x128xf32>
      %c6_i32 = arith.constant 6 : i32
      %87 = arith.index_cast %c6_i32 : i32 to index
      %c0_30 = arith.constant 0 : index
      %c0_31 = arith.constant 0 : index
      %88 = vector.load %arg3[%87, %c0_30, %c0_31] : memref<8x8x128xf32, #tpu.memory_space<vmem>>, vector<1x8x128xf32>
      %89 = vector.shape_cast %88 : vector<1x8x128xf32> to vector<8x128xf32>
      %cst_32 = arith.constant dense<0.000000e+00> : vector<8x128xf32>
      %90 = tpu.matmul %80, %12, %cst_32 {dimension_numbers = #tpu.dot_dimension_numbers<[1], [0], [0], [1], [0, 0, 1, 1], [], []>} : vector<8x128xf32>, vector<128x128xf32>, vector<8x128xf32> -> vector<8x128xf32>
      %91 = arith.addf %89, %90 : vector<8x128xf32>
      %92 = math.tanh %91 : vector<8x128xf32>
      %93 = arith.addi %3, %c6_i32 : i32
      %94 = vector.broadcast %93 : i32 to vector<8x1xi32>
      %95 = arith.cmpi eq, %11, %94 : vector<8x1xi32>
      %96 = vector.shape_cast %95 : vector<8x1xi1> to vector<8x1xi1>
      %97 = vector.broadcast %96 : vector<8x1xi1> to vector<8x128xi1>
      %98 = arith.select %97, %92, %86 : vector<8x128xi1>, vector<8x128xf32>
      %c7_i32 = arith.constant 7 : i32
      %99 = arith.index_cast %c7_i32 : i32 to index
      %c0_33 = arith.constant 0 : index
      %c0_34 = arith.constant 0 : index
      %100 = vector.load %arg3[%99, %c0_33, %c0_34] : memref<8x8x128xf32, #tpu.memory_space<vmem>>, vector<1x8x128xf32>
      %101 = vector.shape_cast %100 : vector<1x8x128xf32> to vector<8x128xf32>
      %cst_35 = arith.constant dense<0.000000e+00> : vector<8x128xf32>
      %102 = tpu.matmul %92, %12, %cst_35 {dimension_numbers = #tpu.dot_dimension_numbers<[1], [0], [0], [1], [0, 0, 1, 1], [], []>} : vector<8x128xf32>, vector<128x128xf32>, vector<8x128xf32> -> vector<8x128xf32>
      %103 = arith.addf %101, %102 : vector<8x128xf32>
      %104 = math.tanh %103 : vector<8x128xf32>
      %105 = arith.addi %3, %c7_i32 : i32
      %106 = vector.broadcast %105 : i32 to vector<8x1xi32>
      %107 = arith.cmpi eq, %11, %106 : vector<8x1xi32>
      %108 = vector.shape_cast %107 : vector<8x1xi1> to vector<8x1xi1>
      %109 = vector.broadcast %108 : vector<8x1xi1> to vector<8x128xi1>
      %110 = arith.select %109, %104, %98 : vector<8x128xi1>, vector<8x128xf32>
      %c8_i32_36 = arith.constant 8 : i32
      %c0_37 = arith.constant 0 : index
      %c0_38 = arith.constant 0 : index
      %111 = vector.load %arg8[%c0_37, %c0_38] : memref<8x128xf32, #tpu.memory_space<vmem>>, vector<8x128xf32>
      tpu.vector_store %arg8[%c0_37, %c0_38], %104 {strides = array<i32>} : memref<8x128xf32, #tpu.memory_space<vmem>>, vector<8x128xf32>,
      %c0_39 = arith.constant 0 : index
      %c0_40 = arith.constant 0 : index
      %112 = vector.load %arg9[%c0_39, %c0_40] : memref<8x128xf32, #tpu.memory_space<vmem>>, vector<8x128xf32>
      tpu.vector_store %arg9[%c0_39, %c0_40], %110 {strides = array<i32>} : memref<8x128xf32, #tpu.memory_space<vmem>>, vector<8x128xf32>,
    } else {
    }
    %c0_i32_2 = arith.constant 0 : i32
    %8 = arith.cmpi eq, %arg0, %c0_i32_2 : i32
    %9 = arith.extui %8 : i1 to i32
    %c0_i32_3 = arith.constant 0 : i32
    %10 = arith.cmpi ne, %9, %c0_i32_3 : i32
    scf.if %10 {
      %c0_4 = arith.constant 0 : index
      %c0_5 = arith.constant 0 : index
      %11 = vector.load %arg9[%c0_4, %c0_5] : memref<8x128xf32, #tpu.memory_space<vmem>>, vector<8x128xf32>
      %c0_6 = arith.constant 0 : index
      %c0_7 = arith.constant 0 : index
      %12 = vector.load %arg5[%c0_6, %c0_7] : memref<128x128xf32, #tpu.memory_space<vmem>>, vector<128x128xf32>
      %cst = arith.constant dense<0.000000e+00> : vector<8x128xf32>
      %13 = tpu.matmul %11, %12, %cst {dimension_numbers = #tpu.dot_dimension_numbers<[1], [0], [0], [1], [0, 0, 1, 1], [], []>} : vector<8x128xf32>, vector<128x128xf32>, vector<8x128xf32> -> vector<8x128xf32>
      %c0_8 = arith.constant 0 : index
      %c0_9 = arith.constant 0 : index
      %14 = vector.load %arg6[%c0_8, %c0_9] : memref<1x128xf32, #tpu.memory_space<vmem>>, vector<1x128xf32>
      %15 = vector.broadcast %14 : vector<1x128xf32> to vector<8x128xf32>
      %16 = arith.addf %13, %15 : vector<8x128xf32>
      %c0_10 = arith.constant 0 : index
      %c0_11 = arith.constant 0 : index
      %17 = vector.load %arg7[%c0_10, %c0_11] : memref<8x128xf32, #tpu.memory_space<vmem>>, vector<8x128xf32>
      tpu.vector_store %arg7[%c0_10, %c0_11], %16 {strides = array<i32>} : memref<8x128xf32, #tpu.memory_space<vmem>>, vector<8x128xf32>,
    } else {
    }
    return
  }
  func.func @transform_0(%arg0: i32, %arg1: memref<1xi32, #tpu.memory_space<smem>>) -> (i32, i32) {
    %c0_i32 = arith.constant 0 : i32
    %c0_i32_0 = arith.constant 0 : i32
    %c0_i32_1 = arith.constant 0 : i32
    return %c0_i32, %c0_i32_0 : i32, i32
  }
  func.func @transform_1(%arg0: i32, %arg1: memref<1xi32, #tpu.memory_space<smem>>) -> (i32, i32, i32) {
    %c0_i32 = arith.constant 0 : i32
    %c0_i32_0 = arith.constant 0 : i32
    %c0_i32_1 = arith.constant 0 : i32
    return %arg0, %c0_i32, %c0_i32_0 : i32, i32, i32
  }
  func.func @transform_2(%arg0: i32, %arg1: memref<1xi32, #tpu.memory_space<smem>>) -> (i32, i32) {
    %c0_i32 = arith.constant 0 : i32
    %c0_i32_0 = arith.constant 0 : i32
    %c0_i32_1 = arith.constant 0 : i32
    return %c0_i32, %c0_i32_0 : i32, i32
  }
  func.func @transform_3(%arg0: i32, %arg1: memref<1xi32, #tpu.memory_space<smem>>) -> (i32, i32) {
    %c0_i32 = arith.constant 0 : i32
    %c0_i32_0 = arith.constant 0 : i32
    %c0_i32_1 = arith.constant 0 : i32
    return %c0_i32, %c0_i32_0 : i32, i32
  }
  func.func @transform_4(%arg0: i32, %arg1: memref<1xi32, #tpu.memory_space<smem>>) -> (i32, i32) {
    %c0_i32 = arith.constant 0 : i32
    %c0_i32_0 = arith.constant 0 : i32
    %c0_i32_1 = arith.constant 0 : i32
    return %c0_i32, %c0_i32_0 : i32, i32
  }
  func.func @transform_5(%arg0: i32, %arg1: memref<1xi32, #tpu.memory_space<smem>>) -> (i32, i32) {
    %c0_i32 = arith.constant 0 : i32
    %c0_i32_0 = arith.constant 0 : i32
    %c0_i32_1 = arith.constant 0 : i32
    return %c0_i32, %c0_i32_0 : i32, i32
  }
}

</mosaic_0001>

<llo_original>
// kernel: tpu_custom_call.1
$region0: #{tpu_custom_call.1}
  #allocation0 [shape = 'u32[]', space=smem, size = 0x4, offset = 0x4, fixed_abs, tag = 'smem constant byte address 0x4 - core index']
  #allocation1 [shape = 'u32[144,128]{1,0:T(1,128)}', space=vmem, size = 0x12000, scoped, tag = 'internal scratch']
  #allocation2 [shape = 'f32[8,128]{1,0:T(8,128)}', space=vmem, size = 0x1000, scoped, tag = 'scratch operand']
  #allocation3 [shape = 'f32[8,128]{1,0:T(8,128)}', space=vmem, size = 0x1000, scoped, tag = 'scratch operand']
  #allocation4 [shape = 's32[1]{0}', space=sflag, size = 0x4, scoped, tag = 'scoped memory for tpu_custom_call.1']
  #allocation5 [shape = 's32[1]{0:T(128)S(6)}', space=smem, size = 0x200, scoped, tag = 'prefetched SMEM operand 0']
  %s0 = inlined_call_operand.<no memory space> [shape: s32[1], index: 0, kind: input, shape index: {}]
  %s1 = inlined_call_operand.vmem [shape: s32[8,1], index: 1, kind: input, shape index: {}]
  %s2 = inlined_call_operand.hbm [shape: f32[8,8,128], index: 2, kind: input, shape index: {}]
  %s3 = inlined_call_operand.hbm [shape: f32[128,128], index: 3, kind: input, shape index: {}]
  %s4 = inlined_call_operand.hbm [shape: f32[128,128], index: 4, kind: input, shape index: {}]
  %s5 = inlined_call_operand.vmem [shape: f32[1,128], index: 5, kind: input, shape index: {}]
  %s6 = inlined_call_operand.hbm [shape: f32[8,128], index: 6, kind: output, shape index: {}]
  %s7 = sld [smem:[#allocation0]]
  $region54: #{tpu_custom_call.1} parent=0
    _
  %s9 = ssub.s32 1, %s7
  %s10 = scalar_select 0, %s9, %s7
  %11 = sst [smem:[#allocation5]] %s0
  $region1: #{tpu_custom_call.1} parent=0
    #allocation6 [shape = 'u8[32768]{0}', space=vmem, size = 0x8000, scoped, tag = 'input window, operand 2, single buffered']
    #allocation7 [shape = 's32[1]{0}', space=sflag, size = 0x4, scoped, tag = 'scoped memory for tpu_custom_call.1']
    #allocation8 [shape = 's32[1]{0}', space=sflag, size = 0x4, scoped, tag = 'scoped memory for tpu_custom_call.1']
    #allocation9 [shape = 'u8[65536]{0}', space=vmem, size = 0x10000, scoped, tag = 'input window, operand 3, single buffered']
    #allocation10 [shape = 's32[1]{0}', space=sflag, size = 0x4, scoped, tag = 'scoped memory for tpu_custom_call.1']
    #allocation11 [shape = 'u8[65536]{0}', space=vmem, size = 0x10000, scoped, tag = 'input window, operand 4, single buffered']
    #allocation12 [shape = 'u8[4096]{0}', space=vmem, size = 0x1000, scoped, tag = 'output window, operand 0, single buffered']
    %12 = vsyncpa [#allocation7], 0
    %13 = vsyncpa [#allocation10], 0
    %14 = vsyncpa [#allocation8], 0
    // Predicated region
    $region2: #{tpu_custom_call.1} parent=1 // pred_check
      _
    $region3: #{tpu_custom_call.1} parent=1 // pred_check_branch
      %16 = sbr.rel (0) target = $region5
    $region4: #{tpu_custom_call.1} parent=1 // pred_region
      _
    $region5: #{tpu_custom_call.1} parent=1 // pred_fallthru
      _
    // Predicated region
    $region6: #{tpu_custom_call.1} parent=1 // pred_check
      _
    $region7: #{tpu_custom_call.1} parent=1 // pred_check_branch
      %18 = sbr.rel (0) target = $region9
    $region8: #{tpu_custom_call.1} parent=1 // pred_region
      %s20 = ssub.s32 1024, 1024
      %21 = vsyncadd [#allocation7], %s20
      %s22 = sshll.u32 [#allocation6], 4
      %s23 = int_to_ptr.vmem [resolvable:$true] %s22
      %28 = dma.hbm_to_vmem [thread:$0]  %s2, 1024, %s23, [#allocation7], 128, 128, 8
    $region9: #{tpu_custom_call.1} parent=1 // pred_fallthru
      _
    // Predicated region
    $region10: #{tpu_custom_call.1} parent=1 // pred_check
      _
    $region11: #{tpu_custom_call.1} parent=1 // pred_check_branch
      %30 = sbr.rel (0) target = $region13
    $region12: #{tpu_custom_call.1} parent=1 // pred_region
      %s32 = ssub.s32 2048, 2048
      %33 = vsyncadd [#allocation10], %s32
      %s34 = sshll.u32 [#allocation9], 4
      %s35 = int_to_ptr.vmem [resolvable:$true] %s34
      %40 = dma.hbm_to_vmem [thread:$0]  %s3, 2048, %s35, [#allocation10], 128, 128, 8
    $region13: #{tpu_custom_call.1} parent=1 // pred_fallthru
      _
    // Predicated region
    $region14: #{tpu_custom_call.1} parent=1 // pred_check
      _
    $region15: #{tpu_custom_call.1} parent=1 // pred_check_branch
      %42 = sbr.rel (0) target = $region17
    $region16: #{tpu_custom_call.1} parent=1 // pred_region
      %s44 = ssub.s32 2048, 2048
      %45 = vsyncadd [#allocation10], %s44
      %s46 = sshll.u32 [#allocation11], 4
      %s47 = int_to_ptr.vmem [resolvable:$true] %s46
      %52 = dma.hbm_to_vmem [thread:$0]  %s4, 2048, %s47, [#allocation10], 128, 128, 8
    $region17: #{tpu_custom_call.1} parent=1 // pred_fallthru
      _
    // Predicated region
    $region18: #{tpu_custom_call.1} parent=1 // pred_check
      _
    $region19: #{tpu_custom_call.1} parent=1 // pred_check_branch
      %54 = sbr.rel (0) target = $region21
    $region20: #{tpu_custom_call.1} parent=1 // pred_region
      _
    $region21: #{tpu_custom_call.1} parent=1 // pred_fallthru
      _
    // Predicated region
    $region22: #{tpu_custom_call.1} parent=1 // pred_check
      _
    $region23: #{tpu_custom_call.1} parent=1 // pred_check_branch
      %56 = sbr.rel (0) target = $region25
    $region24: #{tpu_custom_call.1} parent=1 // pred_region
      %57 = dma.done [#allocation7], 1024
    $region25: #{tpu_custom_call.1} parent=1 // pred_fallthru
      _
    // Predicated region
    $region26: #{tpu_custom_call.1} parent=1 // pred_check
      _
    $region27: #{tpu_custom_call.1} parent=1 // pred_check_branch
      %59 = sbr.rel (0) target = $region29
    $region28: #{tpu_custom_call.1} parent=1 // pred_region
      %60 = dma.done [#allocation10], 2048
    $region29: #{tpu_custom_call.1} parent=1 // pred_fallthru
      _
    // Predicated region
    $region30: #{tpu_custom_call.1} parent=1 // pred_check
      _
    $region31: #{tpu_custom_call.1} parent=1 // pred_check_branch
      %62 = sbr.rel (0) target = $region33
    $region32: #{tpu_custom_call.1} parent=1 // pred_region
      %63 = dma.done [#allocation10], 2048
    $region33: #{tpu_custom_call.1} parent=1 // pred_fallthru
      _
    %p64 = scmp.eq.s32.totalorder 0, 0
    // Predicated region
    $region34: #{tpu_custom_call.1} parent=1 // pred_check
      %p65 = pneg %p64
    $region35: #{tpu_custom_call.1} parent=1 // pred_check_branch
      %67 = sbr.rel (%p65) target = $region37
    $region36: #{tpu_custom_call.1} parent=1 // pred_region
      %68 = vst [vmem:[#allocation2] sm:$0xff] 0.0
      %69 = vst [vmem:[#allocation3] sm:$0xff] 0.0
    $region37: #{tpu_custom_call.1} parent=1 // pred_fallthru
      _
    %s70 = smul.u32 0, 8
    %s71 = sld [smem:[#allocation5]]
    %p72 = scmp.lt.s32.totalorder %s70, %s71
    // Predicated region
    $region38: #{tpu_custom_call.1} parent=1 // pred_check
      %p73 = pneg %p72
    $region39: #{tpu_custom_call.1} parent=1 // pred_check_branch
      %75 = sbr.rel (%p73) target = $region41
    $region40: #{tpu_custom_call.1} parent=1 // pred_region
      %v76 = vld [vmem:[%s1] sm:$0xff]
      %v77 = vld [vmem:[#allocation9] sm:$0xff]
      %v78 = vld [vmem:[#allocation9 + $0x8] sm:$0xff]
      %v79 = vld [vmem:[#allocation9 + $0x10] sm:$0xff]
      %v80 = vld [vmem:[#allocation9 + $0x18] sm:$0xff]
      %v81 = vld [vmem:[#allocation9 + $0x20] sm:$0xff]
      %v82 = vld [vmem:[#allocation9 + $0x28] sm:$0xff]
      %v83 = vld [vmem:[#allocation9 + $0x30] sm:$0xff]
      %v84 = vld [vmem:[#allocation9 + $0x38] sm:$0xff]
      %v85 = vld [vmem:[#allocation9 + $0x40] sm:$0xff]
      %v86 = vld [vmem:[#allocation9 + $0x48] sm:$0xff]
      %v87 = vld [vmem:[#allocation9 + $0x50] sm:$0xff]
      %v88 = vld [vmem:[#allocation9 + $0x58] sm:$0xff]
      %v89 = vld [vmem:[#allocation9 + $0x60] sm:$0xff]
      %v90 = vld [vmem:[#allocation9 + $0x68] sm:$0xff]
      %v91 = vld [vmem:[#allocation9 + $0x70] sm:$0xff]
      %v92 = vld [vmem:[#allocation9 + $0x78] sm:$0xff]
      %v93 = vld [vmem:[#allocation2] sm:$0xff]
      %v94 = vld [vmem:[#allocation3] sm:$0xff]
      %v95 = vld [vmem:[#allocation6] sm:$0xff]
      %96 = vmatprep.subr.mxu0 0.0
      %97 = vmatpush1.msra.mxu0 %v77
      %98 = vmatprep.subr.mxu0 0.0
      %99 = vmatpush1.msra.mxu0 %v78
      %100 = vmatprep.subr.mxu0 0.0
      %101 = vmatpush1.msra.mxu0 %v79
      %102 = vmatprep.subr.mxu0 0.0
      %103 = vmatpush1.msra.mxu0 %v80
      %104 = vmatprep.subr.mxu0 0.0
      %105 = vmatpush1.msra.mxu0 %v81
      %106 = vmatprep.subr.mxu0 0.0
      %107 = vmatpush1.msra.mxu0 %v82
      %108 = vmatprep.subr.mxu0 0.0
      %109 = vmatpush1.msra.mxu0 %v83
      %110 = vmatprep.subr.mxu0 0.0
      %111 = vmatpush1.msra.mxu0 %v84
      %112 = vmatprep.subr.mxu0 0.0
      %113 = vmatpush1.msra.mxu0 %v85
      %114 = vmatprep.subr.mxu0 0.0
      %115 = vmatpush1.msra.mxu0 %v86
      %116 = vmatprep.subr.mxu0 0.0
      %117 = vmatpush1.msra.mxu0 %v87
      %118 = vmatprep.subr.mxu0 0.0
      %119 = vmatpush1.msra.mxu0 %v88
      %120 = vmatprep.subr.mxu0 0.0
      %121 = vmatpush1.msra.mxu0 %v89
      %122 = vmatprep.subr.mxu0 0.0
      %123 = vmatpush1.msra.mxu0 %v90
      %124 = vmatprep.subr.mxu0 0.0
      %125 = vmatpush1.msra.mxu0 %v91
      %126 = vmatprep.subr.mxu0 0.0
      %127 = vmatpush1.msra.mxu0 %v92
      %128 = vmatprep.subr.mxu0 0.0
      %129 = vmatpush1.msra.mxu0 0.0
      %130 = vmatprep.subr.mxu0 0.0
      %131 = vmatpush1.msra.mxu0 0.0
      %132 = vmatprep.subr.mxu0 0.0
      %133 = vmatpush1.msra.mxu0 0.0
      %134 = vmatprep.subr.mxu0 0.0
      %135 = vmatpush1.msra.mxu0 0.0
      %136 = vmatprep.subr.mxu0 0.0
      %137 = vmatpush1.msra.mxu0 0.0
      %138 = vmatprep.subr.mxu0 0.0
      %139 = vmatpush1.msra.mxu0 0.0
      %140 = vmatprep.subr.mxu0 0.0
      %141 = vmatpush1.msra.mxu0 0.0
      %142 = vmatprep.subr.mxu0 0.0
      %143 = vmatpush1.msra.mxu0 0.0
      %144 = vmatprep.subr.mxu0 0.0
      %145 = vmatpush1.msra.mxu0 0.0
      %146 = vmatprep.subr.mxu0 0.0
      %147 = vmatpush1.msra.mxu0 0.0
      %148 = vmatprep.subr.mxu0 0.0
      %149 = vmatpush1.msra.mxu0 0.0
      %150 = vmatprep.subr.mxu0 0.0
      %151 = vmatpush1.msra.mxu0 0.0
      %152 = vmatprep.subr.mxu0 0.0
      %153 = vmatpush1.msra.mxu0 0.0
      %154 = vmatprep.subr.mxu0 0.0
      %155 = vmatpush1.msra.mxu0 0.0
      %156 = vmatprep.subr.mxu0 0.0
      %157 = vmatpush1.msra.mxu0 0.0
      %158 = vmatprep.subr.mxu0 0.0
      %159 = vmatpush1.msra.mxu0 0.0
      %160 = vmatprep.mubr.f32.mxu0 0.0
      %161 = vmatmul.mubr.f32.gmra.mrb[0].mxu0 %v93
      %v162 = vpop.f32.mrb[0].mxu0
      %v163 = vadd.f32 0.0, %v162
      %v164 = vpop.f32.mrb[0].mxu0
      %165 = vdwg.mxu0
      %v166 = vadd.f32 %v95, %v163
      %v167 = vtanh.pop %v166
      %v168 = vstv %s70
      %vm169 = vcmp.eq.s32.totalorder %v76, %v168
      %v170 = vsel %vm169, 1, 0
      %171 = vset.pattern.permute.xlu0 0
      %172 = vperm.xlu0 %171, %v170
      %v173 = vpop.permute.xlu0 %172
      %vm174 = vcmp.eq.s32.totalorder %v173, 1
      %v175 = vsel %vm174, %v167, %v94
      %s176 = scalar_lea.vmem [#allocation6], 8
      %v177 = vld [vmem:[%s176] sm:$0xff]
      %178 = vmatprep.subr.mxu0 0.0
      %179 = vmatpush1.msra.mxu0 %v77
      %180 = vmatprep.subr.mxu0 0.0
      %181 = vmatpush1.msra.mxu0 %v78
      %182 = vmatprep.subr.mxu0 0.0
      %183 = vmatpush1.msra.mxu0 %v79
      %184 = vmatprep.subr.mxu0 0.0
      %185 = vmatpush1.msra.mxu0 %v80
      %186 = vmatprep.subr.mxu0 0.0
      %187 = vmatpush1.msra.mxu0 %v81
      %188 = vmatprep.subr.mxu0 0.0
      %189 = vmatpush1.msra.mxu0 %v82
      %190 = vmatprep.subr.mxu0 0.0
      %191 = vmatpush1.msra.mxu0 %v83
      %192 = vmatprep.subr.mxu0 0.0
      %193 = vmatpush1.msra.mxu0 %v84
      %194 = vmatprep.subr.mxu0 0.0
      %195 = vmatpush1.msra.mxu0 %v85
      %196 = vmatprep.subr.mxu0 0.0
      %197 = vmatpush1.msra.mxu0 %v86
      %198 = vmatprep.subr.mxu0 0.0
      %199 = vmatpush1.msra.mxu0 %v87
      %200 = vmatprep.subr.mxu0 0.0
      %201 = vmatpush1.msra.mxu0 %v88
      %202 = vmatprep.subr.mxu0 0.0
      %203 = vmatpush1.msra.mxu0 %v89
      %204 = vmatprep.subr.mxu0 0.0
      %205 = vmatpush1.msra.mxu0 %v90
      %206 = vmatprep.subr.mxu0 0.0
      %207 = vmatpush1.msra.mxu0 %v91
      %208 = vmatprep.subr.mxu0 0.0
      %209 = vmatpush1.msra.mxu0 %v92
      %210 = vmatprep.subr.mxu0 0.0
      %211 = vmatpush1.msra.mxu0 0.0
      %212 = vmatprep.subr.mxu0 0.0
      %213 = vmatpush1.msra.mxu0 0.0
      %214 = vmatprep.subr.mxu0 0.0
      %215 = vmatpush1.msra.mxu0 0.0
      %216 = vmatprep.subr.mxu0 0.0
      %217 = vmatpush1.msra.mxu0 0.0
      %218 = vmatprep.subr.mxu0 0.0
      %219 = vmatpush1.msra.mxu0 0.0
      %220 = vmatprep.subr.mxu0 0.0
      %221 = vmatpush1.msra.mxu0 0.0
      %222 = vmatprep.subr.mxu0 0.0
      %223 = vmatpush1.msra.mxu0 0.0
      %224 = vmatprep.subr.mxu0 0.0
      %225 = vmatpush1.msra.mxu0 0.0
      %226 = vmatprep.subr.mxu0 0.0
      %227 = vmatpush1.msra.mxu0 0.0
      %228 = vmatprep.subr.mxu0 0.0
      %229 = vmatpush1.msra.mxu0 0.0
      %230 = vmatprep.subr.mxu0 0.0
      %231 = vmatpush1.msra.mxu0 0.0
      %232 = vmatprep.subr.mxu0 0.0
      %233 = vmatpush1.msra.mxu0 0.0
      %234 = vmatprep.subr.mxu0 0.0
      %235 = vmatpush1.msra.mxu0 0.0
      %236 = vmatprep.subr.mxu0 0.0
      %237 = vmatpush1.msra.mxu0 0.0
      %238 = vmatprep.subr.mxu0 0.0
      %239 = vmatpush1.msra.mxu0 0.0
      %240 = vmatprep.subr.mxu0 0.0
      %241 = vmatpush1.msra.mxu0 0.0
      %242 = vmatprep.mubr.f32.mxu0 0.0
      %243 = vmatmul.mubr.f32.gmra.mrb[0].mxu0 %v167
      %v244 = vpop.f32.mrb[0].mxu0
      %v245 = vadd.f32 0.0, %v244
      %v246 = vpop.f32.mrb[0].mxu0
      %247 = vdwg.mxu0
      %v248 = vadd.f32 %v177, %v245
      %v249 = vtanh.pop %v248
      %s250 = sadd.s32 %s70, 1
      %v251 = vstv %s250
      %vm252 = vcmp.eq.s32.totalorder %v76, %v251
      %v253 = vsel %vm252, 1, 0
      %254 = vset.pattern.permute.xlu0 0
      %255 = vperm.xlu0 %254, %v253
      %v256 = vpop.permute.xlu0 %255
      %vm257 = vcmp.eq.s32.totalorder %v256, 1
      %v258 = vsel %vm257, %v249, %v175
      %s259 = scalar_lea.vmem [#allocation6], 16
      %v260 = vld [vmem:[%s259] sm:$0xff]
      %261 = vmatprep.subr.mxu0 0.0
      %262 = vmatpush1.msra.mxu0 %v77
      %263 = vmatprep.subr.mxu0 0.0
      %264 = vmatpush1.msra.mxu0 %v78
      %265 = vmatprep.subr.mxu0 0.0
      %266 = vmatpush1.msra.mxu0 %v79
      %267 = vmatprep.subr.mxu0 0.0
      %268 = vmatpush1.msra.mxu0 %v80
      %269 = vmatprep.subr.mxu0 0.0
      %270 = vmatpush1.msra.mxu0 %v81
      %271 = vmatprep.subr.mxu0 0.0
      %272 = vmatpush1.msra.mxu0 %v82
      %273 = vmatprep.subr.mxu0 0.0
      %274 = vmatpush1.msra.mxu0 %v83
      %275 = vmatprep.subr.mxu0 0.0
      %276 = vmatpush1.msra.mxu0 %v84
      %277 = vmatprep.subr.mxu0 0.0
      %278 = vmatpush1.msra.mxu0 %v85
      %279 = vmatprep.subr.mxu0 0.0
      %280 = vmatpush1.msra.mxu0 %v86
      %281 = vmatprep.subr.mxu0 0.0
      %282 = vmatpush1.msra.mxu0 %v87
      %283 = vmatprep.subr.mxu0 0.0
      %284 = vmatpush1.msra.mxu0 %v88
      %285 = vmatprep.subr.mxu0 0.0
      %286 = vmatpush1.msra.mxu0 %v89
      %287 = vmatprep.subr.mxu0 0.0
      %288 = vmatpush1.msra.mxu0 %v90
      %289 = vmatprep.subr.mxu0 0.0
      %290 = vmatpush1.msra.mxu0 %v91
      %291 = vmatprep.subr.mxu0 0.0
      %292 = vmatpush1.msra.mxu0 %v92
      %293 = vmatprep.subr.mxu0 0.0
      %294 = vmatpush1.msra.mxu0 0.0
      %295 = vmatprep.subr.mxu0 0.0
      %296 = vmatpush1.msra.mxu0 0.0
      %297 = vmatprep.subr.mxu0 0.0
      %298 = vmatpush1.msra.mxu0 0.0
      %299 = vmatprep.subr.mxu0 0.0
      %300 = vmatpush1.msra.mxu0 0.0
      %301 = vmatprep.subr.mxu0 0.0
      %302 = vmatpush1.msra.mxu0 0.0
      %303 = vmatprep.subr.mxu0 0.0
      %304 = vmatpush1.msra.mxu0 0.0
      %305 = vmatprep.subr.mxu0 0.0
      %306 = vmatpush1.msra.mxu0 0.0
      %307 = vmatprep.subr.mxu0 0.0
      %308 = vmatpush1.msra.mxu0 0.0
      %309 = vmatprep.subr.mxu0 0.0
      %310 = vmatpush1.msra.mxu0 0.0
      %311 = vmatprep.subr.mxu0 0.0
      %312 = vmatpush1.msra.mxu0 0.0
      %313 = vmatprep.subr.mxu0 0.0
      %314 = vmatpush1.msra.mxu0 0.0
      %315 = vmatprep.subr.mxu0 0.0
      %316 = vmatpush1.msra.mxu0 0.0
      %317 = vmatprep.subr.mxu0 0.0
      %318 = vmatpush1.msra.mxu0 0.0
      %319 = vmatprep.subr.mxu0 0.0
      %320 = vmatpush1.msra.mxu0 0.0
      %321 = vmatprep.subr.mxu0 0.0
      %322 = vmatpush1.msra.mxu0 0.0
      %323 = vmatprep.subr.mxu0 0.0
      %324 = vmatpush1.msra.mxu0 0.0
      %325 = vmatprep.mubr.f32.mxu0 0.0
      %326 = vmatmul.mubr.f32.gmra.mrb[0].mxu0 %v249
      %v327 = vpop.f32.mrb[0].mxu0
      %v328 = vadd.f32 0.0, %v327
      %v329 = vpop.f32.mrb[0].mxu0
      %330 = vdwg.mxu0
      %v331 = vadd.f32 %v260, %v328
      %v332 = vtanh.pop %v331
      %s333 = sadd.s32 %s70, 2
      %v334 = vstv %s333
      %vm335 = vcmp.eq.s32.totalorder %v76, %v334
      %v336 = vsel %vm335, 1, 0
      %337 = vset.pattern.permute.xlu0 0
      %338 = vperm.xlu0 %337, %v336
      %v339 = vpop.permute.xlu0 %338
      %vm340 = vcmp.eq.s32.totalorder %v339, 1
      %v341 = vsel %vm340, %v332, %v258
      %s342 = scalar_lea.vmem [#allocation6], 24
      %v343 = vld [vmem:[%s342] sm:$0xff]
      %344 = vmatprep.subr.mxu0 0.0
      %345 = vmatpush1.msra.mxu0 %v77
      %346 = vmatprep.subr.mxu0 0.0
      %347 = vmatpush1.msra.mxu0 %v78
      %348 = vmatprep.subr.mxu0 0.0
      %349 = vmatpush1.msra.mxu0 %v79
      %350 = vmatprep.subr.mxu0 0.0
      %351 = vmatpush1.msra.mxu0 %v80
      %352 = vmatprep.subr.mxu0 0.0
      %353 = vmatpush1.msra.mxu0 %v81
      %354 = vmatprep.subr.mxu0 0.0
      %355 = vmatpush1.msra.mxu0 %v82
      %356 = vmatprep.subr.mxu0 0.0
      %357 = vmatpush1.msra.mxu0 %v83
      %358 = vmatprep.subr.mxu0 0.0
      %359 = vmatpush1.msra.mxu0 %v84
      %360 = vmatprep.subr.mxu0 0.0
      %361 = vmatpush1.msra.mxu0 %v85
      %362 = vmatprep.subr.mxu0 0.0
      %363 = vmatpush1.msra.mxu0 %v86
      %364 = vmatprep.subr.mxu0 0.0
      %365 = vmatpush1.msra.mxu0 %v87
      %366 = vmatprep.subr.mxu0 0.0
      %367 = vmatpush1.msra.mxu0 %v88
      %368 = vmatprep.subr.mxu0 0.0
      %369 = vmatpush1.msra.mxu0 %v89
      %370 = vmatprep.subr.mxu0 0.0
      %371 = vmatpush1.msra.mxu0 %v90
      %372 = vmatprep.subr.mxu0 0.0
      %373 = vmatpush1.msra.mxu0 %v91
      %374 = vmatprep.subr.mxu0 0.0
      %375 = vmatpush1.msra.mxu0 %v92
      %376 = vmatprep.subr.mxu0 0.0
      %377 = vmatpush1.msra.mxu0 0.0
      %378 = vmatprep.subr.mxu0 0.0
      %379 = vmatpush1.msra.mxu0 0.0
      %380 = vmatprep.subr.mxu0 0.0
      %381 = vmatpush1.msra.mxu0 0.0
      %382 = vmatprep.subr.mxu0 0.0
      %383 = vmatpush1.msra.mxu0 0.0
      %384 = vmatprep.subr.mxu0 0.0
      %385 = vmatpush1.msra.mxu0 0.0
      %386 = vmatprep.subr.mxu0 0.0
      %387 = vmatpush1.msra.mxu0 0.0
      %388 = vmatprep.subr.mxu0 0.0
      %389 = vmatpush1.msra.mxu0 0.0
      %390 = vmatprep.subr.mxu0 0.0
      %391 = vmatpush1.msra.mxu0 0.0
      %392 = vmatprep.subr.mxu0 0.0
      %393 = vmatpush1.msra.mxu0 0.0
      %394 = vmatprep.subr.mxu0 0.0
      %395 = vmatpush1.msra.mxu0 0.0
      %396 = vmatprep.subr.mxu0 0.0
      %397 = vmatpush1.msra.mxu0 0.0
      %398 = vmatprep.subr.mxu0 0.0
      %399 = vmatpush1.msra.mxu0 0.0
      %400 = vmatprep.subr.mxu0 0.0
      %401 = vmatpush1.msra.mxu0 0.0
      %402 = vmatprep.subr.mxu0 0.0
      %403 = vmatpush1.msra.mxu0 0.0
      %404 = vmatprep.subr.mxu0 0.0
      %405 = vmatpush1.msra.mxu0 0.0
      %406 = vmatprep.subr.mxu0 0.0
      %407 = vmatpush1.msra.mxu0 0.0
      %408 = vmatprep.mubr.f32.mxu0 0.0
      %409 = vmatmul.mubr.f32.gmra.mrb[0].mxu0 %v332
      %v410 = vpop.f32.mrb[0].mxu0
      %v411 = vadd.f32 0.0, %v410
      %v412 = vpop.f32.mrb[0].mxu0
      %413 = vdwg.mxu0
      %v414 = vadd.f32 %v343, %v411
      %v415 = vtanh.pop %v414
      %s416 = sadd.s32 %s70, 3
      %v417 = vstv %s416
      %vm418 = vcmp.eq.s32.totalorder %v76, %v417
      %v419 = vsel %vm418, 1, 0
      %420 = vset.pattern.permute.xlu0 0
      %421 = vperm.xlu0 %420, %v419
      %v422 = vpop.permute.xlu0 %421
      %vm423 = vcmp.eq.s32.totalorder %v422, 1
      %v424 = vsel %vm423, %v415, %v341
      %s425 = scalar_lea.vmem [#allocation6], 32
      %v426 = vld [vmem:[%s425] sm:$0xff]
      %427 = vmatprep.subr.mxu0 0.0
      %428 = vmatpush1.msra.mxu0 %v77
      %429 = vmatprep.subr.mxu0 0.0
      %430 = vmatpush1.msra.mxu0 %v78
      %431 = vmatprep.subr.mxu0 0.0
      %432 = vmatpush1.msra.mxu0 %v79
      %433 = vmatprep.subr.mxu0 0.0
      %434 = vmatpush1.msra.mxu0 %v80
      %435 = vmatprep.subr.mxu0 0.0
      %436 = vmatpush1.msra.mxu0 %v81
      %437 = vmatprep.subr.mxu0 0.0
      %438 = vmatpush1.msra.mxu0 %v82
      %439 = vmatprep.subr.mxu0 0.0
      %440 = vmatpush1.msra.mxu0 %v83
      %441 = vmatprep.subr.mxu0 0.0
      %442 = vmatpush1.msra.mxu0 %v84
      %443 = vmatprep.subr.mxu0 0.0
      %444 = vmatpush1.msra.mxu0 %v85
      %445 = vmatprep.subr.mxu0 0.0
      %446 = vmatpush1.msra.mxu0 %v86
      %447 = vmatprep.subr.mxu0 0.0
      %448 = vmatpush1.msra.mxu0 %v87
      %449 = vmatprep.subr.mxu0 0.0
      %450 = vmatpush1.msra.mxu0 %v88
      %451 = vmatprep.subr.mxu0 0.0
      %452 = vmatpush1.msra.mxu0 %v89
      %453 = vmatprep.subr.mxu0 0.0
      %454 = vmatpush1.msra.mxu0 %v90
      %455 = vmatprep.subr.mxu0 0.0
      %456 = vmatpush1.msra.mxu0 %v91
      %457 = vmatprep.subr.mxu0 0.0
      %458 = vmatpush1.msra.mxu0 %v92
      %459 = vmatprep.subr.mxu0 0.0
      %460 = vmatpush1.msra.mxu0 0.0
      %461 = vmatprep.subr.mxu0 0.0
      %462 = vmatpush1.msra.mxu0 0.0
      %463 = vmatprep.subr.mxu0 0.0
      %464 = vmatpush1.msra.mxu0 0.0
      %465 = vmatprep.subr.mxu0 0.0
      %466 = vmatpush1.msra.mxu0 0.0
      %467 = vmatprep.subr.mxu0 0.0
      %468 = vmatpush1.msra.mxu0 0.0
      %469 = vmatprep.subr.mxu0 0.0
      %470 = vmatpush1.msra.mxu0 0.0
      %471 = vmatprep.subr.mxu0 0.0
      %472 = vmatpush1.msra.mxu0 0.0
      %473 = vmatprep.subr.mxu0 0.0
      %474 = vmatpush1.msra.mxu0 0.0
      %475 = vmatprep.subr.mxu0 0.0
      %476 = vmatpush1.msra.mxu0 0.0
      %477 = vmatprep.subr.mxu0 0.0
      %478 = vmatpush1.msra.mxu0 0.0
      %479 = vmatprep.subr.mxu0 0.0
      %480 = vmatpush1.msra.mxu0 0.0
      %481 = vmatprep.subr.mxu0 0.0
      %482 = vmatpush1.msra.mxu0 0.0
      %483 = vmatprep.subr.mxu0 0.0
      %484 = vmatpush1.msra.mxu0 0.0
      %485 = vmatprep.subr.mxu0 0.0
      %486 = vmatpush1.msra.mxu0 0.0
      %487 = vmatprep.subr.mxu0 0.0
      %488 = vmatpush1.msra.mxu0 0.0
      %489 = vmatprep.subr.mxu0 0.0
      %490 = vmatpush1.msra.mxu0 0.0
      %491 = vmatprep.mubr.f32.mxu0 0.0
      %492 = vmatmul.mubr.f32.gmra.mrb[0].mxu0 %v415
      %v493 = vpop.f32.mrb[0].mxu0
      %v494 = vadd.f32 0.0, %v493
      %v495 = vpop.f32.mrb[0].mxu0
      %496 = vdwg.mxu0
      %v497 = vadd.f32 %v426, %v494
      %v498 = vtanh.pop %v497
      %s499 = sadd.s32 %s70, 4
      %v500 = vstv %s499
      %vm501 = vcmp.eq.s32.totalorder %v76, %v500
      %v502 = vsel %vm501, 1, 0
      %503 = vset.pattern.permute.xlu0 0
      %504 = vperm.xlu0 %503, %v502
      %v505 = vpop.permute.xlu0 %504
      %vm506 = vcmp.eq.s32.totalorder %v505, 1
      %v507 = vsel %vm506, %v498, %v424
      %s508 = scalar_lea.vmem [#allocation6], 40
      %v509 = vld [vmem:[%s508] sm:$0xff]
      %510 = vmatprep.subr.mxu0 0.0
      %511 = vmatpush1.msra.mxu0 %v77
      %512 = vmatprep.subr.mxu0 0.0
      %513 = vmatpush1.msra.mxu0 %v78
      %514 = vmatprep.subr.mxu0 0.0
      %515 = vmatpush1.msra.mxu0 %v79
      %516 = vmatprep.subr.mxu0 0.0
      %517 = vmatpush1.msra.mxu0 %v80
      %518 = vmatprep.subr.mxu0 0.0
      %519 = vmatpush1.msra.mxu0 %v81
      %520 = vmatprep.subr.mxu0 0.0
      %521 = vmatpush1.msra.mxu0 %v82
      %522 = vmatprep.subr.mxu0 0.0
      %523 = vmatpush1.msra.mxu0 %v83
      %524 = vmatprep.subr.mxu0 0.0
      %525 = vmatpush1.msra.mxu0 %v84
      %526 = vmatprep.subr.mxu0 0.0
      %527 = vmatpush1.msra.mxu0 %v85
      %528 = vmatprep.subr.mxu0 0.0
      %529 = vmatpush1.msra.mxu0 %v86
      %530 = vmatprep.subr.mxu0 0.0
      %531 = vmatpush1.msra.mxu0 %v87
      %532 = vmatprep.subr.mxu0 0.0
      %533 = vmatpush1.msra.mxu0 %v88
      %534 = vmatprep.subr.mxu0 0.0
      %535 = vmatpush1.msra.mxu0 %v89
      %536 = vmatprep.subr.mxu0 0.0
      %537 = vmatpush1.msra.mxu0 %v90
      %538 = vmatprep.subr.mxu0 0.0
      %539 = vmatpush1.msra.mxu0 %v91
      %540 = vmatprep.subr.mxu0 0.0
      %541 = vmatpush1.msra.mxu0 %v92
      %542 = vmatprep.subr.mxu0 0.0
      %543 = vmatpush1.msra.mxu0 0.0
      %544 = vmatprep.subr.mxu0 0.0
      %545 = vmatpush1.msra.mxu0 0.0
      %546 = vmatprep.subr.mxu0 0.0
      %547 = vmatpush1.msra.mxu0 0.0
      %548 = vmatprep.subr.mxu0 0.0
      %549 = vmatpush1.msra.mxu0 0.0
      %550 = vmatprep.subr.mxu0 0.0
      %551 = vmatpush1.msra.mxu0 0.0
      %552 = vmatprep.subr.mxu0 0.0
      %553 = vmatpush1.msra.mxu0 0.0
      %554 = vmatprep.subr.mxu0 0.0
      %555 = vmatpush1.msra.mxu0 0.0
      %556 = vmatprep.subr.mxu0 0.0
      %557 = vmatpush1.msra.mxu0 0.0
      %558 = vmatprep.subr.mxu0 0.0
      %559 = vmatpush1.msra.mxu0 0.0
      %560 = vmatprep.subr.mxu0 0.0
      %561 = vmatpush1.msra.mxu0 0.0
      %562 = vmatprep.subr.mxu0 0.0
      %563 = vmatpush1.msra.mxu0 0.0
      %564 = vmatprep.subr.mxu0 0.0
      %565 = vmatpush1.msra.mxu0 0.0
      %566 = vmatprep.subr.mxu0 0.0
      %567 = vmatpush1.msra.mxu0 0.0
      %568 = vmatprep.subr.mxu0 0.0
      %569 = vmatpush1.msra.mxu0 0.0
      %570 = vmatprep.subr.mxu0 0.0
      %571 = vmatpush1.msra.mxu0 0.0
      %572 = vmatprep.subr.mxu0 0.0
      %573 = vmatpush1.msra.mxu0 0.0
      %574 = vmatprep.mubr.f32.mxu0 0.0
      %575 = vmatmul.mubr.f32.gmra.mrb[0].mxu0 %v498
      %v576 = vpop.f32.mrb[0].mxu0
      %v577 = vadd.f32 0.0, %v576
      %v578 = vpop.f32.mrb[0].mxu0
      %579 = vdwg.mxu0
      %v580 = vadd.f32 %v509, %v577
      %v581 = vtanh.pop %v580
      %s582 = sadd.s32 %s70, 5
      %v583 = vstv %s582
      %vm584 = vcmp.eq.s32.totalorder %v76, %v583
      %v585 = vsel %vm584, 1, 0
      %586 = vset.pattern.permute.xlu0 0
      %587 = vperm.xlu0 %586, %v585
      %v588 = vpop.permute.xlu0 %587
      %vm589 = vcmp.eq.s32.totalorder %v588, 1
      %v590 = vsel %vm589, %v581, %v507
      %s591 = scalar_lea.vmem [#allocation6], 48
      %v592 = vld [vmem:[%s591] sm:$0xff]
      %593 = vmatprep.subr.mxu0 0.0
      %594 = vmatpush1.msra.mxu0 %v77
      %595 = vmatprep.subr.mxu0 0.0
      %596 = vmatpush1.msra.mxu0 %v78
      %597 = vmatprep.subr.mxu0 0.0
      %598 = vmatpush1.msra.mxu0 %v79
      %599 = vmatprep.subr.mxu0 0.0
      %600 = vmatpush1.msra.mxu0 %v80
      %601 = vmatprep.subr.mxu0 0.0
      %602 = vmatpush1.msra.mxu0 %v81
      %603 = vmatprep.subr.mxu0 0.0
      %604 = vmatpush1.msra.mxu0 %v82
      %605 = vmatprep.subr.mxu0 0.0
      %606 = vmatpush1.msra.mxu0 %v83
      %607 = vmatprep.subr.mxu0 0.0
      %608 = vmatpush1.msra.mxu0 %v84
      %609 = vmatprep.subr.mxu0 0.0
      %610 = vmatpush1.msra.mxu0 %v85
      %611 = vmatprep.subr.mxu0 0.0
      %612 = vmatpush1.msra.mxu0 %v86
      %613 = vmatprep.subr.mxu0 0.0
      %614 = vmatpush1.msra.mxu0 %v87
      %615 = vmatprep.subr.mxu0 0.0
      %616 = vmatpush1.msra.mxu0 %v88
      %617 = vmatprep.subr.mxu0 0.0
      %618 = vmatpush1.msra.mxu0 %v89
      %619 = vmatprep.subr.mxu0 0.0
      %620 = vmatpush1.msra.mxu0 %v90
      %621 = vmatprep.subr.mxu0 0.0
      %622 = vmatpush1.msra.mxu0 %v91
      %623 = vmatprep.subr.mxu0 0.0
      %624 = vmatpush1.msra.mxu0 %v92
      %625 = vmatprep.subr.mxu0 0.0
      %626 = vmatpush1.msra.mxu0 0.0
      %627 = vmatprep.subr.mxu0 0.0
      %628 = vmatpush1.msra.mxu0 0.0
      %629 = vmatprep.subr.mxu0 0.0
      %630 = vmatpush1.msra.mxu0 0.0
      %631 = vmatprep.subr.mxu0 0.0
      %632 = vmatpush1.msra.mxu0 0.0
      %633 = vmatprep.subr.mxu0 0.0
      %634 = vmatpush1.msra.mxu0 0.0
      %635 = vmatprep.subr.mxu0 0.0
      %636 = vmatpush1.msra.mxu0 0.0
      %637 = vmatprep.subr.mxu0 0.0
      %638 = vmatpush1.msra.mxu0 0.0
      %639 = vmatprep.subr.mxu0 0.0
      %640 = vmatpush1.msra.mxu0 0.0
      %641 = vmatprep.subr.mxu0 0.0
      %642 = vmatpush1.msra.mxu0 0.0
      %643 = vmatprep.subr.mxu0 0.0
      %644 = vmatpush1.msra.mxu0 0.0
      %645 = vmatprep.subr.mxu0 0.0
      %646 = vmatpush1.msra.mxu0 0.0
      %647 = vmatprep.subr.mxu0 0.0
      %648 = vmatpush1.msra.mxu0 0.0
      %649 = vmatprep.subr.mxu0 0.0
      %650 = vmatpush1.msra.mxu0 0.0
      %651 = vmatprep.subr.mxu0 0.0
      %652 = vmatpush1.msra.mxu0 0.0
      %653 = vmatprep.subr.mxu0 0.0
      %654 = vmatpush1.msra.mxu0 0.0
      %655 = vmatprep.subr.mxu0 0.0
      %656 = vmatpush1.msra.mxu0 0.0
      %657 = vmatprep.mubr.f32.mxu0 0.0
      %658 = vmatmul.mubr.f32.gmra.mrb[0].mxu0 %v581
      %v659 = vpop.f32.mrb[0].mxu0
      %v660 = vadd.f32 0.0, %v659
      %v661 = vpop.f32.mrb[0].mxu0
      %662 = vdwg.mxu0
      %v663 = vadd.f32 %v592, %v660
      %v664 = vtanh.pop %v663
      %s665 = sadd.s32 %s70, 6
      %v666 = vstv %s665
      %vm667 = vcmp.eq.s32.totalorder %v76, %v666
      %v668 = vsel %vm667, 1, 0
      %669 = vset.pattern.permute.xlu0 0
      %670 = vperm.xlu0 %669, %v668
      %v671 = vpop.permute.xlu0 %670
      %vm672 = vcmp.eq.s32.totalorder %v671, 1
      %v673 = vsel %vm672, %v664, %v590
      %s674 = scalar_lea.vmem [#allocation6], 56
      %v675 = vld [vmem:[%s674] sm:$0xff]
      %676 = vmatprep.subr.mxu0 0.0
      %677 = vmatpush1.msra.mxu0 %v77
      %678 = vmatprep.subr.mxu0 0.0
      %679 = vmatpush1.msra.mxu0 %v78
      %680 = vmatprep.subr.mxu0 0.0
      %681 = vmatpush1.msra.mxu0 %v79
      %682 = vmatprep.subr.mxu0 0.0
      %683 = vmatpush1.msra.mxu0 %v80
      %684 = vmatprep.subr.mxu0 0.0
      %685 = vmatpush1.msra.mxu0 %v81
      %686 = vmatprep.subr.mxu0 0.0
      %687 = vmatpush1.msra.mxu0 %v82
      %688 = vmatprep.subr.mxu0 0.0
      %689 = vmatpush1.msra.mxu0 %v83
      %690 = vmatprep.subr.mxu0 0.0
      %691 = vmatpush1.msra.mxu0 %v84
      %692 = vmatprep.subr.mxu0 0.0
      %693 = vmatpush1.msra.mxu0 %v85
      %694 = vmatprep.subr.mxu0 0.0
      %695 = vmatpush1.msra.mxu0 %v86
      %696 = vmatprep.subr.mxu0 0.0
      %697 = vmatpush1.msra.mxu0 %v87
      %698 = vmatprep.subr.mxu0 0.0
      %699 = vmatpush1.msra.mxu0 %v88
      %700 = vmatprep.subr.mxu0 0.0
      %701 = vmatpush1.msra.mxu0 %v89
      %702 = vmatprep.subr.mxu0 0.0
      %703 = vmatpush1.msra.mxu0 %v90
      %704 = vmatprep.subr.mxu0 0.0
      %705 = vmatpush1.msra.mxu0 %v91
      %706 = vmatprep.subr.mxu0 0.0
      %707 = vmatpush1.msra.mxu0 %v92
      %708 = vmatprep.subr.mxu0 0.0
      %709 = vmatpush1.msra.mxu0 0.0
      %710 = vmatprep.subr.mxu0 0.0
      %711 = vmatpush1.msra.mxu0 0.0
      %712 = vmatprep.subr.mxu0 0.0
      %713 = vmatpush1.msra.mxu0 0.0
      %714 = vmatprep.subr.mxu0 0.0
      %715 = vmatpush1.msra.mxu0 0.0
      %716 = vmatprep.subr.mxu0 0.0
      %717 = vmatpush1.msra.mxu0 0.0
      %718 = vmatprep.subr.mxu0 0.0
      %719 = vmatpush1.msra.mxu0 0.0
      %720 = vmatprep.subr.mxu0 0.0
      %721 = vmatpush1.msra.mxu0 0.0
      %722 = vmatprep.subr.mxu0 0.0
      %723 = vmatpush1.msra.mxu0 0.0
      %724 = vmatprep.subr.mxu0 0.0
      %725 = vmatpush1.msra.mxu0 0.0
      %726 = vmatprep.subr.mxu0 0.0
      %727 = vmatpush1.msra.mxu0 0.0
      %728 = vmatprep.subr.mxu0 0.0
      %729 = vmatpush1.msra.mxu0 0.0
      %730 = vmatprep.subr.mxu0 0.0
      %731 = vmatpush1.msra.mxu0 0.0
      %732 = vmatprep.subr.mxu0 0.0
      %733 = vmatpush1.msra.mxu0 0.0
      %734 = vmatprep.subr.mxu0 0.0
      %735 = vmatpush1.msra.mxu0 0.0
      %736 = vmatprep.subr.mxu0 0.0
      %737 = vmatpush1.msra.mxu0 0.0
      %738 = vmatprep.subr.mxu0 0.0
      %739 = vmatpush1.msra.mxu0 0.0
      %740 = vmatprep.mubr.f32.mxu0 0.0
      %741 = vmatmul.mubr.f32.gmra.mrb[0].mxu0 %v664
      %v742 = vpop.f32.mrb[0].mxu0
      %v743 = vadd.f32 0.0, %v742
      %v744 = vpop.f32.mrb[0].mxu0
      %745 = vdwg.mxu0
      %v746 = vadd.f32 %v675, %v743
      %v747 = vtanh.pop %v746
      %s748 = sadd.s32 %s70, 7
      %v749 = vstv %s748
      %vm750 = vcmp.eq.s32.totalorder %v76, %v749
      %v751 = vsel %vm750, 1, 0
      %752 = vset.pattern.permute.xlu0 0
      %753 = vperm.xlu0 %752, %v751
      %v754 = vpop.permute.xlu0 %753
      %vm755 = vcmp.eq.s32.totalorder %v754, 1
      %v756 = vsel %vm755, %v747, %v673
      %757 = vst [vmem:[#allocation2] sm:$0xff] %v747
      %758 = vst [vmem:[#allocation3] sm:$0xff] %v756
    $region41: #{tpu_custom_call.1} parent=1 // pred_fallthru
      _
    // Predicated region
    $region42: #{tpu_custom_call.1} parent=1 // pred_check
      %p759 = pneg %p64
    $region43: #{tpu_custom_call.1} parent=1 // pred_check_branch
      %761 = sbr.rel (%p759) target = $region45
    $region44: #{tpu_custom_call.1} parent=1 // pred_region
      %v762 = vld [vmem:[#allocation3] sm:$0xff]
      %v763 = vld [vmem:[#allocation11] sm:$0xff]
      %v764 = vld [vmem:[#allocation11 + $0x8] sm:$0xff]
      %v765 = vld [vmem:[#allocation11 + $0x10] sm:$0xff]
      %v766 = vld [vmem:[#allocation11 + $0x18] sm:$0xff]
      %v767 = vld [vmem:[#allocation11 + $0x20] sm:$0xff]
      %v768 = vld [vmem:[#allocation11 + $0x28] sm:$0xff]
      %v769 = vld [vmem:[#allocation11 + $0x30] sm:$0xff]
      %v770 = vld [vmem:[#allocation11 + $0x38] sm:$0xff]
      %v771 = vld [vmem:[#allocation11 + $0x40] sm:$0xff]
      %v772 = vld [vmem:[#allocation11 + $0x48] sm:$0xff]
      %v773 = vld [vmem:[#allocation11 + $0x50] sm:$0xff]
      %v774 = vld [vmem:[#allocation11 + $0x58] sm:$0xff]
      %v775 = vld [vmem:[#allocation11 + $0x60] sm:$0xff]
      %v776 = vld [vmem:[#allocation11 + $0x68] sm:$0xff]
      %v777 = vld [vmem:[#allocation11 + $0x70] sm:$0xff]
      %v778 = vld [vmem:[#allocation11 + $0x78] sm:$0xff]
      %v779 = vld [vmem:[%s5] sm:$0x1]
      %v781 = vlaneseq
      %v782 = vshrl.u32 %v781, 7
      %v783 = vsub.s32 0, %v782
      %v784 = vrot.slane %v779, %v783
      %786 = vmatprep.subr.mxu0 0.0
      %787 = vmatpush1.msra.mxu0 %v763
      %788 = vmatprep.subr.mxu0 0.0
      %789 = vmatpush1.msra.mxu0 %v764
      %790 = vmatprep.subr.mxu0 0.0
      %791 = vmatpush1.msra.mxu0 %v765
      %792 = vmatprep.subr.mxu0 0.0
      %793 = vmatpush1.msra.mxu0 %v766
      %794 = vmatprep.subr.mxu0 0.0
      %795 = vmatpush1.msra.mxu0 %v767
      %796 = vmatprep.subr.mxu0 0.0
      %797 = vmatpush1.msra.mxu0 %v768
      %798 = vmatprep.subr.mxu0 0.0
      %799 = vmatpush1.msra.mxu0 %v769
      %800 = vmatprep.subr.mxu0 0.0
      %801 = vmatpush1.msra.mxu0 %v770
      %802 = vmatprep.subr.mxu0 0.0
      %803 = vmatpush1.msra.mxu0 %v771
      %804 = vmatprep.subr.mxu0 0.0
      %805 = vmatpush1.msra.mxu0 %v772
      %806 = vmatprep.subr.mxu0 0.0
      %807 = vmatpush1.msra.mxu0 %v773
      %808 = vmatprep.subr.mxu0 0.0
      %809 = vmatpush1.msra.mxu0 %v774
      %810 = vmatprep.subr.mxu0 0.0
      %811 = vmatpush1.msra.mxu0 %v775
      %812 = vmatprep.subr.mxu0 0.0
      %813 = vmatpush1.msra.mxu0 %v776
      %814 = vmatprep.subr.mxu0 0.0
      %815 = vmatpush1.msra.mxu0 %v777
      %816 = vmatprep.subr.mxu0 0.0
      %817 = vmatpush1.msra.mxu0 %v778
      %818 = vmatprep.subr.mxu0 0.0
      %819 = vmatpush1.msra.mxu0 0.0
      %820 = vmatprep.subr.mxu0 0.0
      %821 = vmatpush1.msra.mxu0 0.0
      %822 = vmatprep.subr.mxu0 0.0
      %823 = vmatpush1.msra.mxu0 0.0
      %824 = vmatprep.subr.mxu0 0.0
      %825 = vmatpush1.msra.mxu0 0.0
      %826 = vmatprep.subr.mxu0 0.0
      %827 = vmatpush1.msra.mxu0 0.0
      %828 = vmatprep.subr.mxu0 0.0
      %829 = vmatpush1.msra.mxu0 0.0
      %830 = vmatprep.subr.mxu0 0.0
      %831 = vmatpush1.msra.mxu0 0.0
      %832 = vmatprep.subr.mxu0 0.0
      %833 = vmatpush1.msra.mxu0 0.0
      %834 = vmatprep.subr.mxu0 0.0
      %835 = vmatpush1.msra.mxu0 0.0
      %836 = vmatprep.subr.mxu0 0.0
      %837 = vmatpush1.msra.mxu0 0.0
      %838 = vmatprep.subr.mxu0 0.0
      %839 = vmatpush1.msra.mxu0 0.0
      %840 = vmatprep.subr.mxu0 0.0
      %841 = vmatpush1.msra.mxu0 0.0
      %842 = vmatprep.subr.mxu0 0.0
      %843 = vmatpush1.msra.mxu0 0.0
      %844 = vmatprep.subr.mxu0 0.0
      %845 = vmatpush1.msra.mxu0 0.0
      %846 = vmatprep.subr.mxu0 0.0
      %847 = vmatpush1.msra.mxu0 0.0
      %848 = vmatprep.subr.mxu0 0.0
      %849 = vmatpush1.msra.mxu0 0.0
      %850 = vmatprep.mubr.f32.mxu0 0.0
      %851 = vmatmul.mubr.f32.gmra.mrb[0].mxu0 %v762
      %v852 = vpop.f32.mrb[0].mxu0
      %v853 = vadd.f32 %v784, %v852
      %v854 = vpop.f32.mrb[0].mxu0
      %855 = vdwg.mxu0
      %856 = vst [vmem:[#allocation12] sm:$0xff] %v853
    $region45: #{tpu_custom_call.1} parent=1 // pred_fallthru
      _
    // Predicated region
    $region46: #{tpu_custom_call.1} parent=1 // pred_check
      _
    $region47: #{tpu_custom_call.1} parent=1 // pred_check_branch
      %858 = sbr.rel (0) target = $region49
    $region48: #{tpu_custom_call.1} parent=1 // pred_region
      %s860 = ssub.s32 128, 128
      %861 = vsyncadd [#allocation8], %s860
      %s863 = sshll.u32 [#allocation12], 4
      %s864 = int_to_ptr.vmem [resolvable:$true] %s863
      %866 = dma.vmem_to_hbm [thread:$0]  %s864, 128, %s6, [#allocation8]
    $region49: #{tpu_custom_call.1} parent=1 // pred_fallthru
      _
    // Predicated region
    $region50: #{tpu_custom_call.1} parent=1 // pred_check
      _
    $region51: #{tpu_custom_call.1} parent=1 // pred_check_branch
      %868 = sbr.rel (0) target = $region53
    $region52: #{tpu_custom_call.1} parent=1 // pred_region
      %869 = dma.done [#allocation8], 128
    $region53: #{tpu_custom_call.1} parent=1 // pred_fallthru
      _
    %870 = vsyncpa [#allocation7], 1
    %871 = vsyncpa [#allocation10], 1
    %872 = vsyncpa [#allocation8], 1

</llo_original>
